<compile_context>
chip_gen: v6e
topology: v6e:2x2x1
jax: 0.10.0
libtpu: 0.0.40
codegen_flags: <defaults>
</compile_context>

<pallas_src>
import numpy as np
import jax
import jax.numpy as jnp
from jax.experimental import pallas as pl
from jax.experimental.pallas import tpu as pltpu

EXPANSION = 4
BATCH_BLOCK_MAX = 512   # batch rows folded into the matmul M dim per grid step


def bottleneck_kernel(x_ref, t1_ref, t2_ref, t3_ref, tsc_ref, alphas_ref, out_ref):
    """One batch tile per grid step; everything is a lane-dense 2-D matmul."""
    a1 = alphas_ref[0]
    a2 = alphas_ref[1]
    a3 = alphas_ref[2]

    x = x_ref[...]                                                   # (B, H*W*Cin)

    # conv1 (3x3 VALID) as one Toeplitz matmul + TRelu1
    h1 = jnp.dot(x, t1_ref[...], preferred_element_type=jnp.float32)
    h1 = jnp.maximum(h1 - a1, 0.0) + a1                              # (B, H1*W1*C1)

    # conv2 (3x3 VALID) as one Toeplitz matmul + TRelu2
    h2 = jnp.dot(h1, t2_ref[...], preferred_element_type=jnp.float32)
    h2 = jnp.maximum(h2 - a2, 0.0) + a2                              # (B, H2*W2*C1)

    # conv3 (1x1, block-diag) + strided 1x1 shortcut (strided block-diag on x)
    o = jnp.dot(h2, t3_ref[...], preferred_element_type=jnp.float32)
    o = o + jnp.dot(x, tsc_ref[...], preferred_element_type=jnp.float32)

    # TRelu3 + single lane-dense (B, H2*W2*C3) store.
    out_ref[...] = (jnp.maximum(o - a3, 0.0) + a3).astype(out_ref.dtype)


# --------------------- wrapper-side weight layout plumbing ---------------------

def _conv_toeplitz(w, h_in, w_in):
    """HWIO (KH, KW, Cin, Cout) -> (h_in*w_in*Cin, h_out*w_out*Cout) 2-D Toeplitz
    slab implementing a VALID conv on (h, w, c)-flattened activations."""
    kh_t, kw_t, cin, cout = w.shape
    h_out, w_out = h_in - kh_t + 1, w_in - kw_t + 1
    sel = np.zeros((kh_t, kw_t, h_in, w_in, h_out, w_out), np.float32)
    for a in range(kh_t):
        for b in range(kw_t):
            for p in range(h_out):
                for q in range(w_out):
                    sel[a, b, p + a, q + b, p, q] = 1.0
    slab = jnp.einsum('abijpq,abcd->ijcpqd', jnp.asarray(sel), w)
    return slab.reshape(h_in * w_in * cin, h_out * w_out * cout)


def _strided_1x1_toeplitz(w, h_in, w_in, stride, h_out, w_out):
    """(Cin, Cout) 1x1 stride-s conv weight -> (h_in*w_in*Cin, h_out*w_out*Cout)
    strided block-diagonal slab acting directly on the full x slab."""
    cin, cout = w.shape
    sel = np.zeros((h_in, w_in, h_out, w_out), np.float32)
    for p in range(h_out):
        for q in range(w_out):
            sel[p * stride, q * stride, p, q] = 1.0
    slab = jnp.einsum('ijpq,cd->ijcpqd', jnp.asarray(sel), w)
    return slab.reshape(h_in * w_in * cin, h_out * w_out * cout)


def bottleneck_forward(x, w1, w2, w3, wsc, alphas, stride):
    """x: (N, H, W, Cin) NHWC; w1/w2: HWIO (3,3,.,.); w3/wsc: HWIO (1,1,.,.)."""
    N, H, W, Cin = x.shape
    C1 = w1.shape[-1]
    C3 = EXPANSION * C1
    H1, W1 = H - 2, W - 2
    H2, W2 = H - 4, W - 4
    assert (H - 1) // stride + 1 == H2 and (W - 1) // stride + 1 == W2, (
        "main-path and shortcut spatial sizes must match for the residual add")

    K0, K1, K2 = H * W * Cin, H1 * W1 * C1, H2 * W2 * C1
    KO = H2 * W2 * C3

    # One-time weight repacking (layout plumbing, not compute hoisting).
    t1 = _conv_toeplitz(w1, H, W)                                    # (K0, K1)
    t2 = _conv_toeplitz(w2, H1, W1)                                  # (K1, K2)
    t3 = _strided_1x1_toeplitz(w3[0, 0], H2, W2, 1, H2, W2)          # (K2, KO)
    tsc = _strided_1x1_toeplitz(wsc[0, 0], H, W, stride, H2, W2)     # (K0, KO)

    # Batch blocking: fold B rows into the matmul M dim per grid step.
    if N <= BATCH_BLOCK_MAX:
        B, N_pad = N, N
    else:
        B = BATCH_BLOCK_MAX
        N_pad = ((N + B - 1) // B) * B

    x2d = x.reshape(N, K0)
    if N_pad != N:
        x2d = jnp.pad(x2d, ((0, N_pad - N), (0, 0)))

    flops = 2 * N_pad * (K0 * K1 + K1 * K2 + K2 * KO + K0 * KO)
    bytes_accessed = 4 * (N_pad * (K0 + KO) + t1.size + t2.size + t3.size + tsc.size)

    out2d = pl.pallas_call(
        bottleneck_kernel,
        out_shape=jax.ShapeDtypeStruct((N_pad, KO), jnp.float32),
        grid_spec=pltpu.PrefetchScalarGridSpec(
            num_scalar_prefetch=0,
            grid=(pl.cdiv(N_pad, B),),
            in_specs=[
                pl.BlockSpec((B, K0), lambda n: (n, 0)),             # x slab
                pl.BlockSpec((K0, K1), lambda n: (0, 0)),            # T1
                pl.BlockSpec((K1, K2), lambda n: (0, 0)),            # T2
                pl.BlockSpec((K2, KO), lambda n: (0, 0)),            # T3
                pl.BlockSpec((K0, KO), lambda n: (0, 0)),            # Tsc
                pl.BlockSpec(memory_space=pltpu.MemorySpace.SMEM),   # alphas
            ],
            out_specs=pl.BlockSpec((B, KO), lambda n: (n, 0)),
        ),
        compiler_params=pltpu.CompilerParams(
            dimension_semantics=("parallel",)),   # v7x: shard batch tiles over TCs
        cost_estimate=pl.CostEstimate(flops=flops, transcendentals=0,
                                      bytes_accessed=bytes_accessed),
    )(x2d, t1, t2, t3, tsc, alphas)

    return out2d[:N].reshape(N, H2, W2, C3)


# ------------------------- plain-JAX glue / reference -------------------------

def weight_norm_hwio(v):
    # PyTorch weight_norm (dim=0 on OIHW) == per-output-channel L2 norm; with
    # HWIO the output channel is the last axis.  At init g = ||v||, so W == v.
    norm = jnp.sqrt(jnp.sum(v * v, axis=(0, 1, 2), keepdims=True))
    g = norm
    return g * v / norm


def ref_forward(x, w1, w2, w3, wsc, alphas, stride):
    dn = ("NHWC", "HWIO", "NHWC")

    def conv(inp, w, s=1):
        return jax.lax.conv_general_dilated(inp, w, (s, s), "VALID",
                                            dimension_numbers=dn)

    a1, a2, a3 = alphas[0], alphas[1], alphas[2]
    o = conv(x, w1)
    o = jnp.maximum(o - a1, 0.0) + a1
    o = conv(o, w2)
    o = jnp.maximum(o - a2, 0.0) + a2
    o = conv(o, w3)
    sc = conv(x, wsc, s=stride)
    o = o + sc
    return jnp.maximum(o - a3, 0.0) + a3


if __name__ == "__main__":
    key = jax.random.PRNGKey(0)
    N, H, W = 2, 9, 9
    in_planes, out_planes, stride = 4, 4, 2
    C3 = EXPANSION * out_planes

    ks = jax.random.split(key, 5)
    x = jax.random.normal(ks[0], (N, H, W, in_planes), jnp.float32)
    v1 = jax.random.normal(ks[1], (3, 3, in_planes, out_planes), jnp.float32)
    v2 = jax.random.normal(ks[2], (3, 3, out_planes, out_planes), jnp.float32)
    v3 = jax.random.normal(ks[3], (1, 1, out_planes, C3), jnp.float32)
    vsc = jax.random.normal(ks[4], (1, 1, in_planes, C3), jnp.float32)

    w1 = weight_norm_hwio(v1)
    w2 = weight_norm_hwio(v2)
    w3 = weight_norm_hwio(v3)
    wsc = weight_norm_hwio(vsc)
    alphas = jnp.zeros((3,), jnp.float32)   # TRelu alpha init: fill_(0)

    out = bottleneck_forward(x, w1, w2, w3, wsc, alphas, stride)
    out = jax.block_until_ready(out)

    ref = ref_forward(x, w1, w2, w3, wsc, alphas, stride)
    assert out.shape == (N, H - 4, W - 4, C3), out.shape
    max_err = float(jnp.max(jnp.abs(out - ref)))
    assert jnp.allclose(out, ref, atol=1e-4, rtol=1e-4), max_err
    print("KERNEL_OK")
</pallas_src>

<mosaic_0001>
module attributes {stable_mosaic.version = 11 : i64} {
  func.func @bottleneck_kernel(%arg0: i32, %arg1: memref<2x324xf32, #tpu.memory_space<vmem>>, %arg2: memref<324x196xf32, #tpu.memory_space<vmem>>, %arg3: memref<196x100xf32, #tpu.memory_space<vmem>>, %arg4: memref<100x400xf32, #tpu.memory_space<vmem>>, %arg5: memref<324x400xf32, #tpu.memory_space<vmem>>, %arg6: memref<3xf32, #tpu.memory_space<smem>>, %arg7: memref<2x400xf32, #tpu.memory_space<vmem>>) attributes {dimension_semantics = [#tpu.dimension_semantics<parallel>], iteration_bounds = array<i64: 1>, scalar_prefetch = 0 : i64, scratch_operands = 0 : i64, tpu.core_type = #tpu.core_type<tc>, window_params = [{transform_indices = @transform_0, window_bounds = array<i64: 2, 324>}, {pipeline_mode = #tpu.pipeline_mode<synchronous>, transform_indices = @transform_1, window_bounds = array<i64: 324, 196>}, {pipeline_mode = #tpu.pipeline_mode<synchronous>, transform_indices = @transform_2, window_bounds = array<i64: 196, 100>}, {pipeline_mode = #tpu.pipeline_mode<synchronous>, transform_indices = @transform_3, window_bounds = array<i64: 100, 400>}, {pipeline_mode = #tpu.pipeline_mode<synchronous>, transform_indices = @transform_4, window_bounds = array<i64: 324, 400>}, {transform_indices = @transform_5, window_bounds = array<i64: 3>}, {transform_indices = @transform_6, window_bounds = array<i64: 2, 400>}]} {
    %c0 = arith.constant 0 : index
    %0 = memref.load %arg6[%c0] : memref<3xf32, #tpu.memory_space<smem>>
    %c1 = arith.constant 1 : index
    %1 = memref.load %arg6[%c1] : memref<3xf32, #tpu.memory_space<smem>>
    %c2 = arith.constant 2 : index
    %2 = memref.load %arg6[%c2] : memref<3xf32, #tpu.memory_space<smem>>
    %c0_0 = arith.constant 0 : index
    %c0_1 = arith.constant 0 : index
    %3 = vector.load %arg1[%c0_0, %c0_1] : memref<2x324xf32, #tpu.memory_space<vmem>>, vector<2x324xf32>
    %c0_2 = arith.constant 0 : index
    %c0_3 = arith.constant 0 : index
    %4 = vector.load %arg2[%c0_2, %c0_3] : memref<324x196xf32, #tpu.memory_space<vmem>>, vector<324x196xf32>
    %cst = arith.constant dense<0.000000e+00> : vector<2x196xf32>
    %5 = tpu.matmul %3, %4, %cst {dimension_numbers = #tpu.dot_dimension_numbers<[1], [0], [0], [1], [0, 0, 1, 1], [], []>} : vector<2x324xf32>, vector<324x196xf32>, vector<2x196xf32> -> vector<2x196xf32>
    %6 = vector.broadcast %0 : f32 to vector<2x196xf32>
    %7 = arith.subf %5, %6 : vector<2x196xf32>
    %cst_4 = arith.constant 0.000000e+00 : f32
    %8 = vector.broadcast %cst_4 : f32 to vector<2x196xf32>
    %9 = arith.maximumf %7, %8 : vector<2x196xf32>
    %10 = vector.broadcast %0 : f32 to vector<2x196xf32>
    %11 = arith.addf %9, %10 : vector<2x196xf32>
    %c0_5 = arith.constant 0 : index
    %c0_6 = arith.constant 0 : index
    %12 = vector.load %arg3[%c0_5, %c0_6] : memref<196x100xf32, #tpu.memory_space<vmem>>, vector<196x100xf32>
    %cst_7 = arith.constant dense<0.000000e+00> : vector<2x100xf32>
    %13 = tpu.matmul %11, %12, %cst_7 {dimension_numbers = #tpu.dot_dimension_numbers<[1], [0], [0], [1], [0, 0, 1, 1], [], []>} : vector<2x196xf32>, vector<196x100xf32>, vector<2x100xf32> -> vector<2x100xf32>
    %14 = vector.broadcast %1 : f32 to vector<2x100xf32>
    %15 = arith.subf %13, %14 : vector<2x100xf32>
    %cst_8 = arith.constant 0.000000e+00 : f32
    %16 = vector.broadcast %cst_8 : f32 to vector<2x100xf32>
    %17 = arith.maximumf %15, %16 : vector<2x100xf32>
    %18 = vector.broadcast %1 : f32 to vector<2x100xf32>
    %19 = arith.addf %17, %18 : vector<2x100xf32>
    %c0_9 = arith.constant 0 : index
    %c0_10 = arith.constant 0 : index
    %20 = vector.load %arg4[%c0_9, %c0_10] : memref<100x400xf32, #tpu.memory_space<vmem>>, vector<100x400xf32>
    %cst_11 = arith.constant dense<0.000000e+00> : vector<2x400xf32>
    %21 = tpu.matmul %19, %20, %cst_11 {dimension_numbers = #tpu.dot_dimension_numbers<[1], [0], [0], [1], [0, 0, 1, 1], [], []>} : vector<2x100xf32>, vector<100x400xf32>, vector<2x400xf32> -> vector<2x400xf32>
    %c0_12 = arith.constant 0 : index
    %c0_13 = arith.constant 0 : index
    %22 = vector.load %arg5[%c0_12, %c0_13] : memref<324x400xf32, #tpu.memory_space<vmem>>, vector<324x400xf32>
    %cst_14 = arith.constant dense<0.000000e+00> : vector<2x400xf32>
    %23 = tpu.matmul %3, %22, %cst_14 {dimension_numbers = #tpu.dot_dimension_numbers<[1], [0], [0], [1], [0, 0, 1, 1], [], []>} : vector<2x324xf32>, vector<324x400xf32>, vector<2x400xf32> -> vector<2x400xf32>
    %24 = arith.addf %21, %23 : vector<2x400xf32>
    %25 = vector.broadcast %2 : f32 to vector<2x400xf32>
    %26 = arith.subf %24, %25 : vector<2x400xf32>
    %cst_15 = arith.constant 0.000000e+00 : f32
    %27 = vector.broadcast %cst_15 : f32 to vector<2x400xf32>
    %28 = arith.maximumf %26, %27 : vector<2x400xf32>
    %29 = vector.broadcast %2 : f32 to vector<2x400xf32>
    %30 = arith.addf %28, %29 : vector<2x400xf32>
    %c0_16 = arith.constant 0 : index
    %c0_17 = arith.constant 0 : index
    %31 = vector.load %arg7[%c0_16, %c0_17] : memref<2x400xf32, #tpu.memory_space<vmem>>, vector<2x400xf32>
    tpu.vector_store %arg7[%c0_16, %c0_17], %30 {strides = array<i32>} : memref<2x400xf32, #tpu.memory_space<vmem>>, vector<2x400xf32>,
    return
  }
  func.func @transform_0(%arg0: i32) -> (i32, i32) {
    %c0_i32 = arith.constant 0 : i32
    %c0_i32_0 = arith.constant 0 : i32
    return %arg0, %c0_i32 : i32, i32
  }
  func.func @transform_1(%arg0: i32) -> (i32, i32) {
    %c0_i32 = arith.constant 0 : i32
    %c0_i32_0 = arith.constant 0 : i32
    %c0_i32_1 = arith.constant 0 : i32
    return %c0_i32, %c0_i32_0 : i32, i32
  }
  func.func @transform_2(%arg0: i32) -> (i32, i32) {
    %c0_i32 = arith.constant 0 : i32
    %c0_i32_0 = arith.constant 0 : i32
    %c0_i32_1 = arith.constant 0 : i32
    return %c0_i32, %c0_i32_0 : i32, i32
  }
  func.func @transform_3(%arg0: i32) -> (i32, i32) {
    %c0_i32 = arith.constant 0 : i32
    %c0_i32_0 = arith.constant 0 : i32
    %c0_i32_1 = arith.constant 0 : i32
    return %c0_i32, %c0_i32_0 : i32, i32
  }
  func.func @transform_4(%arg0: i32) -> (i32, i32) {
    %c0_i32 = arith.constant 0 : i32
    %c0_i32_0 = arith.constant 0 : i32
    %c0_i32_1 = arith.constant 0 : i32
    return %c0_i32, %c0_i32_0 : i32, i32
  }
  func.func @transform_5(%arg0: i32) -> i32 {
    %c0_i32 = arith.constant 0 : i32
    %c0_i32_0 = arith.constant 0 : i32
    return %c0_i32 : i32
  }
  func.func @transform_6(%arg0: i32) -> (i32, i32) {
    %c0_i32 = arith.constant 0 : i32
    %c0_i32_0 = arith.constant 0 : i32
    return %arg0, %c0_i32 : i32, i32
  }
}

</mosaic_0001>

<llo_original>
// kernel: tpu_custom_call.1
$region0: #{tpu_custom_call.1}
  #allocation0 [shape = 'u32[]', space=smem, size = 0x4, offset = 0x4, fixed_abs, tag = 'smem constant byte address 0x4 - core index']
  #allocation1 [shape = 'u32[144,128]{1,0:T(1,128)}', space=vmem, size = 0x12000, scoped, tag = 'internal scratch']
  %s0 = inlined_call_operand.vmem [shape: f32[2,324], index: 0, kind: input, shape index: {}]
  %s1 = inlined_call_operand.vmem [shape: f32[324,196], index: 1, kind: input, shape index: {}]
  %s2 = inlined_call_operand.vmem [shape: f32[196,100], index: 2, kind: input, shape index: {}]
  %s3 = inlined_call_operand.vmem [shape: f32[100,400], index: 3, kind: input, shape index: {}]
  %s4 = inlined_call_operand.vmem [shape: f32[324,400], index: 4, kind: input, shape index: {}]
  %s5 = inlined_call_operand.vmem [shape: f32[3], index: 5, kind: input, shape index: {}]
  %s6 = inlined_call_operand.hbm [shape: f32[2,400], index: 6, kind: output, shape index: {}]
  %s7 = sld [smem:[#allocation0]]
  $region38: #{tpu_custom_call.1} parent=0
    _
  %s9 = ssub.s32 1, %s7
  %s10 = scalar_select 0, %s9, %s7
  $region1: #{tpu_custom_call.1} parent=0
    #allocation2 [shape = 'u8[512]{0}', space=smem, size = 0x200, scoped, tag = 'input window, operand 5, single buffered']
    #allocation3 [shape = 's32[1]{0}', space=sflag, size = 0x4, scoped, tag = 'scoped memory for tpu_custom_call.1']
    #allocation4 [shape = 's32[1]{0}', space=sflag, size = 0x4, scoped, tag = 'scoped memory for tpu_custom_call.1']
    #allocation5 [shape = 'u8[4096]{0}', space=vmem, size = 0x1000, scoped, tag = 'output window, operand 0, single buffered']
    %11 = vsyncpa [#allocation4], 0
    %12 = vsyncpa [#allocation3], 0
    // Predicated region
    $region2: #{tpu_custom_call.1} parent=1 // pred_check
      _
    $region3: #{tpu_custom_call.1} parent=1 // pred_check_branch
      %14 = sbr.rel (0) target = $region5
    $region4: #{tpu_custom_call.1} parent=1 // pred_region
      _
    $region5: #{tpu_custom_call.1} parent=1 // pred_fallthru
      _
    // Predicated region
    $region6: #{tpu_custom_call.1} parent=1 // pred_check
      _
    $region7: #{tpu_custom_call.1} parent=1 // pred_check_branch
      %16 = sbr.rel (0) target = $region9
    $region8: #{tpu_custom_call.1} parent=1 // pred_region
      _
    $region9: #{tpu_custom_call.1} parent=1 // pred_fallthru
      _
    // Predicated region
    $region10: #{tpu_custom_call.1} parent=1 // pred_check
      _
    $region11: #{tpu_custom_call.1} parent=1 // pred_check_branch
      %18 = sbr.rel (0) target = $region13
    $region12: #{tpu_custom_call.1} parent=1 // pred_region
      _
    $region13: #{tpu_custom_call.1} parent=1 // pred_fallthru
      _
    // Predicated region
    $region14: #{tpu_custom_call.1} parent=1 // pred_check
      _
    $region15: #{tpu_custom_call.1} parent=1 // pred_check_branch
      %20 = sbr.rel (0) target = $region17
    $region16: #{tpu_custom_call.1} parent=1 // pred_region
      _
    $region17: #{tpu_custom_call.1} parent=1 // pred_fallthru
      _
    // Predicated region
    $region18: #{tpu_custom_call.1} parent=1 // pred_check
      _
    $region19: #{tpu_custom_call.1} parent=1 // pred_check_branch
      %22 = sbr.rel (0) target = $region21
    $region20: #{tpu_custom_call.1} parent=1 // pred_region
      _
    $region21: #{tpu_custom_call.1} parent=1 // pred_fallthru
      _
    // Predicated region
    $region22: #{tpu_custom_call.1} parent=1 // pred_check
      _
    $region23: #{tpu_custom_call.1} parent=1 // pred_check_branch
      %24 = sbr.rel (0) target = $region25
    $region24: #{tpu_custom_call.1} parent=1 // pred_region
      %s26 = ssub.s32 16, 16
      %27 = vsyncadd [#allocation4], %s26
      %s29 = sshll.u32 %s5, 4
      %s30 = int_to_ptr.vmem [resolvable:$true] %s29
      %32 = dma.vmem_to_smem %s30, 16, [#allocation2], [#allocation4]
    $region25: #{tpu_custom_call.1} parent=1 // pred_fallthru
      _
    // Predicated region
    $region26: #{tpu_custom_call.1} parent=1 // pred_check
      _
    $region27: #{tpu_custom_call.1} parent=1 // pred_check_branch
      %34 = sbr.rel (0) target = $region29
    $region28: #{tpu_custom_call.1} parent=1 // pred_region
      %35 = dma.done [#allocation4], 16
    $region29: #{tpu_custom_call.1} parent=1 // pred_fallthru
      _
    %36 = sfence
    %s37 = sld [smem:[#allocation2]]
    %s38 = sld [smem:[#allocation2 + $0x1]]
    %s39 = sld [smem:[#allocation2 + $0x2]]
    %v40 = vld [vmem:[%s0] sm:$0x3f]
    %v41 = vld [vmem:[%s1] sm:$0xff]
    %v42 = vld [vmem:[%s1 + $0x8] sm:$0xff]
    %v43 = vld [vmem:[%s1 + $0x10] sm:$0xff]
    %v44 = vld [vmem:[%s1 + $0x18] sm:$0xff]
    %v45 = vld [vmem:[%s1 + $0x20] sm:$0xff]
    %v46 = vld [vmem:[%s1 + $0x28] sm:$0xff]
    %v47 = vld [vmem:[%s1 + $0x30] sm:$0xff]
    %v48 = vld [vmem:[%s1 + $0x38] sm:$0xff]
    %v49 = vld [vmem:[%s1 + $0x40] sm:$0xff]
    %v50 = vld [vmem:[%s1 + $0x48] sm:$0xff]
    %v51 = vld [vmem:[%s1 + $0x50] sm:$0xff]
    %v52 = vld [vmem:[%s1 + $0x58] sm:$0xff]
    %v53 = vld [vmem:[%s1 + $0x60] sm:$0xff]
    %v54 = vld [vmem:[%s1 + $0x68] sm:$0xff]
    %v55 = vld [vmem:[%s1 + $0x70] sm:$0xff]
    %v56 = vld [vmem:[%s1 + $0x78] sm:$0xff]
    %v57 = vld [vmem:[%s1 + $0x80] sm:$0xff]
    %v58 = vld [vmem:[%s1 + $0x88] sm:$0xff]
    %v59 = vld [vmem:[%s1 + $0x90] sm:$0xff]
    %v60 = vld [vmem:[%s1 + $0x98] sm:$0xff]
    %v61 = vld [vmem:[%s1 + $0xa0] sm:$0xff]
    %v62 = vld [vmem:[%s1 + $0xa8] sm:$0xff]
    %v63 = vld [vmem:[%s1 + $0xb0] sm:$0xff]
    %v64 = vld [vmem:[%s1 + $0xb8] sm:$0xff]
    %v65 = vld [vmem:[%s1 + $0xc0] sm:$0xff]
    %v66 = vld [vmem:[%s1 + $0xc8] sm:$0xff]
    %v67 = vld [vmem:[%s1 + $0xd0] sm:$0xff]
    %v68 = vld [vmem:[%s1 + $0xd8] sm:$0xff]
    %v69 = vld [vmem:[%s1 + $0xe0] sm:$0xff]
    %v70 = vld [vmem:[%s1 + $0xe8] sm:$0xff]
    %v71 = vld [vmem:[%s1 + $0xf0] sm:$0xff]
    %v72 = vld [vmem:[%s1 + $0xf8] sm:$0xff]
    %v73 = vld [vmem:[%s1 + $0x100] sm:$0xff]
    %v74 = vld [vmem:[%s1 + $0x108] sm:$0xff]
    %v75 = vld [vmem:[%s1 + $0x110] sm:$0xff]
    %v76 = vld [vmem:[%s1 + $0x118] sm:$0xff]
    %v77 = vld [vmem:[%s1 + $0x120] sm:$0xff]
    %v78 = vld [vmem:[%s1 + $0x128] sm:$0xff]
    %v79 = vld [vmem:[%s1 + $0x130] sm:$0xff]
    %v80 = vld [vmem:[%s1 + $0x138] sm:$0xff]
    %v81 = vld [vmem:[%s1 + $0x140] sm:$0xff]
    %v82 = vld [vmem:[%s1 + $0x148] sm:$0xff]
    %v83 = vld [vmem:[%s1 + $0x150] sm:$0xff]
    %v84 = vld [vmem:[%s1 + $0x158] sm:$0xff]
    %v85 = vld [vmem:[%s1 + $0x160] sm:$0xff]
    %v86 = vld [vmem:[%s1 + $0x168] sm:$0xff]
    %v87 = vld [vmem:[%s1 + $0x170] sm:$0xff]
    %v88 = vld [vmem:[%s1 + $0x178] sm:$0xff]
    %v89 = vld [vmem:[%s1 + $0x180] sm:$0xff]
    %v90 = vld [vmem:[%s1 + $0x188] sm:$0xff]
    %v91 = vld [vmem:[%s1 + $0x190] sm:$0xff]
    %v92 = vld [vmem:[%s1 + $0x198] sm:$0xff]
    %v93 = vld [vmem:[%s1 + $0x1a0] sm:$0xff]
    %v94 = vld [vmem:[%s1 + $0x1a8] sm:$0xff]
    %v95 = vld [vmem:[%s1 + $0x1b0] sm:$0xff]
    %v96 = vld [vmem:[%s1 + $0x1b8] sm:$0xff]
    %v97 = vld [vmem:[%s1 + $0x1c0] sm:$0xff]
    %v98 = vld [vmem:[%s1 + $0x1c8] sm:$0xff]
    %v99 = vld [vmem:[%s1 + $0x1d0] sm:$0xff]
    %v100 = vld [vmem:[%s1 + $0x1d8] sm:$0xff]
    %v101 = vld [vmem:[%s1 + $0x1e0] sm:$0xff]
    %v102 = vld [vmem:[%s1 + $0x1e8] sm:$0xff]
    %v103 = vld [vmem:[%s1 + $0x1f0] sm:$0xff]
    %v104 = vld [vmem:[%s1 + $0x1f8] sm:$0xff]
    %v105 = vld [vmem:[%s1 + $0x200] sm:$0xff]
    %v106 = vld [vmem:[%s1 + $0x208] sm:$0xff]
    %v107 = vld [vmem:[%s1 + $0x210] sm:$0xff]
    %v108 = vld [vmem:[%s1 + $0x218] sm:$0xff]
    %v109 = vld [vmem:[%s1 + $0x220] sm:$0xff]
    %v110 = vld [vmem:[%s1 + $0x228] sm:$0xff]
    %v111 = vld [vmem:[%s1 + $0x230] sm:$0xff]
    %v112 = vld [vmem:[%s1 + $0x238] sm:$0xff]
    %v113 = vld [vmem:[%s1 + $0x240] sm:$0xff]
    %v114 = vld [vmem:[%s1 + $0x248] sm:$0xff]
    %v115 = vld [vmem:[%s1 + $0x250] sm:$0xff]
    %v116 = vld [vmem:[%s1 + $0x258] sm:$0xff]
    %v117 = vld [vmem:[%s1 + $0x260] sm:$0xff]
    %v118 = vld [vmem:[%s1 + $0x268] sm:$0xff]
    %v119 = vld [vmem:[%s1 + $0x270] sm:$0xff]
    %v120 = vld [vmem:[%s1 + $0x278] sm:$0xff]
    %v121 = vld [vmem:[%s1 + $0x280] sm:$0xf]
    %v122 = vld [vmem:[%s1 + $0x288] sm:$0xf]
    %v124 = vcombine.high %v40, %v40
    %v126 = vunpack.c.l.s4 1983009808
    %v127 = vunpack.c.0.s8 %v126
    %v128 = vlaneseq
    %v129 = vshrl.u32 %v128, 7
    %v130 = vsub.s32 %v127, %v129
    %v131 = vrot.slane %v40, %v130
    %v133 = vunpack.c.l.s4 1983009808
    %v134 = vunpack.c.0.s8 %v133
    %v135 = vlaneseq
    %v136 = vshrl.u32 %v135, 7
    %v137 = vsub.s32 %v134, %v136
    %v138 = vrot.slane %v124, %v137
    %v139 = vcombine.high %v131, %v131
    %vm142 = vcmask 556032
    %v143 = vsel %vm142, %v138, 0
    %vm145 = vcmask 1043456
    %v147 = vsel %vm145, %v121, 0
    %v150 = vsel %vm145, %v122, 0
    %152 = vmatprep.subr.mxu0 %v72
    %153 = vmatpush1.msra.mxu0 %v71
    %154 = vmatprep.subr.mxu0 %v70
    %155 = vmatpush1.msra.mxu0 %v69
    %156 = vmatprep.subr.mxu0 %v68
    %157 = vmatpush1.msra.mxu0 %v67
    %158 = vmatprep.subr.mxu0 %v66
    %159 = vmatpush1.msra.mxu0 %v65
    %160 = vmatprep.subr.mxu0 %v64
    %161 = vmatpush1.msra.mxu0 %v63
    %162 = vmatprep.subr.mxu0 %v62
    %163 = vmatpush1.msra.mxu0 %v61
    %164 = vmatprep.subr.mxu0 %v60
    %165 = vmatpush1.msra.mxu0 %v59
    %166 = vmatprep.subr.mxu0 %v58
    %167 = vmatpush1.msra.mxu0 %v57
    %168 = vmatprep.subr.mxu0 %v56
    %169 = vmatpush1.msra.mxu0 %v55
    %170 = vmatprep.subr.mxu0 %v54
    %171 = vmatpush1.msra.mxu0 %v53
    %172 = vmatprep.subr.mxu0 %v52
    %173 = vmatpush1.msra.mxu0 %v51
    %174 = vmatprep.subr.mxu0 %v50
    %175 = vmatpush1.msra.mxu0 %v49
    %176 = vmatprep.subr.mxu0 %v48
    %177 = vmatpush1.msra.mxu0 %v47
    %178 = vmatprep.subr.mxu0 %v46
    %179 = vmatpush1.msra.mxu0 %v45
    %180 = vmatprep.subr.mxu0 %v44
    %181 = vmatpush1.msra.mxu0 %v43
    %182 = vmatprep.subr.mxu0 %v42
    %183 = vmatpush1.msra.mxu0 %v41
    %184 = vmatprep.subr.mxu0 %v104
    %185 = vmatpush2.msra.mxu0 %v103
    %186 = vmatprep.subr.mxu0 %v102
    %187 = vmatpush2.msra.mxu0 %v101
    %188 = vmatprep.subr.mxu0 %v100
    %189 = vmatpush2.msra.mxu0 %v99
    %190 = vmatprep.subr.mxu0 %v98
    %191 = vmatpush2.msra.mxu0 %v97
    %192 = vmatprep.subr.mxu0 %v96
    %193 = vmatpush2.msra.mxu0 %v95
    %194 = vmatprep.subr.mxu0 %v94
    %195 = vmatpush2.msra.mxu0 %v93
    %196 = vmatprep.subr.mxu0 %v92
    %197 = vmatpush2.msra.mxu0 %v91
    %198 = vmatprep.subr.mxu0 %v90
    %199 = vmatpush2.msra.mxu0 %v89
    %200 = vmatprep.subr.mxu0 %v88
    %201 = vmatpush2.msra.mxu0 %v87
    %202 = vmatprep.subr.mxu0 %v86
    %203 = vmatpush2.msra.mxu0 %v85
    %204 = vmatprep.subr.mxu0 %v84
    %205 = vmatpush2.msra.mxu0 %v83
    %206 = vmatprep.subr.mxu0 %v82
    %207 = vmatpush2.msra.mxu0 %v81
    %208 = vmatprep.subr.mxu0 %v80
    %209 = vmatpush2.msra.mxu0 %v79
    %210 = vmatprep.subr.mxu0 %v78
    %211 = vmatpush2.msra.mxu0 %v77
    %212 = vmatprep.subr.mxu0 %v76
    %213 = vmatpush2.msra.mxu0 %v75
    %214 = vmatprep.subr.mxu0 %v74
    %215 = vmatpush2.msra.mxu0 %v73
    %216 = vmatprep.mubr.f32.mxu0 %v139
    %217 = vmatmul.mubr.f32.gmra.mxu0 %v131
    %v218 = vpop.f32.mrf.mxu0
    %v219 = vadd.f32 0.0, %v218
    %v220 = vpop.f32.mrf.mxu0
    %v221 = vadd.f32 0.0, %v220
    %222 = vdwg.mxu0
    %223 = vmatprep.subr.mxu0 0.0
    %224 = vmatpush1.msra.mxu0 0.0
    %225 = vmatprep.subr.mxu0 0.0
    %226 = vmatpush1.msra.mxu0 0.0
    %227 = vmatprep.subr.mxu0 0.0
    %228 = vmatpush1.msra.mxu0 0.0
    %229 = vmatprep.subr.mxu0 0.0
    %230 = vmatpush1.msra.mxu0 0.0
    %231 = vmatprep.subr.mxu0 0.0
    %232 = vmatpush1.msra.mxu0 0.0
    %233 = vmatprep.subr.mxu0 0.0
    %234 = vmatpush1.msra.mxu0 0.0
    %235 = vmatprep.subr.mxu0 0.0
    %236 = vmatpush1.msra.mxu0 0.0
    %237 = vmatprep.subr.mxu0 %v150
    %238 = vmatpush1.msra.mxu0 %v147
    %239 = vmatprep.subr.mxu0 %v120
    %240 = vmatpush1.msra.mxu0 %v119
    %241 = vmatprep.subr.mxu0 %v118
    %242 = vmatpush1.msra.mxu0 %v117
    %243 = vmatprep.subr.mxu0 %v116
    %244 = vmatpush1.msra.mxu0 %v115
    %245 = vmatprep.subr.mxu0 %v114
    %246 = vmatpush1.msra.mxu0 %v113
    %247 = vmatprep.subr.mxu0 %v112
    %248 = vmatpush1.msra.mxu0 %v111
    %249 = vmatprep.subr.mxu0 %v110
    %250 = vmatpush1.msra.mxu0 %v109
    %251 = vmatprep.subr.mxu0 %v108
    %252 = vmatpush1.msra.mxu0 %v107
    %253 = vmatprep.subr.mxu0 %v106
    %254 = vmatpush1.msra.mxu0 %v105
    %255 = vmatprep.subr.mxu0 0.0
    %256 = vmatpush2.msra.mxu0 0.0
    %257 = vmatprep.subr.mxu0 0.0
    %258 = vmatpush2.msra.mxu0 0.0
    %259 = vmatprep.subr.mxu0 0.0
    %260 = vmatpush2.msra.mxu0 0.0
    %261 = vmatprep.subr.mxu0 0.0
    %262 = vmatpush2.msra.mxu0 0.0
    %263 = vmatprep.subr.mxu0 0.0
    %264 = vmatpush2.msra.mxu0 0.0
    %265 = vmatprep.subr.mxu0 0.0
    %266 = vmatpush2.msra.mxu0 0.0
    %267 = vmatprep.subr.mxu0 0.0
    %268 = vmatpush2.msra.mxu0 0.0
    %269 = vmatprep.subr.mxu0 0.0
    %270 = vmatpush2.msra.mxu0 0.0
    %271 = vmatprep.subr.mxu0 0.0
    %272 = vmatpush2.msra.mxu0 0.0
    %273 = vmatprep.subr.mxu0 0.0
    %274 = vmatpush2.msra.mxu0 0.0
    %275 = vmatprep.subr.mxu0 0.0
    %276 = vmatpush2.msra.mxu0 0.0
    %277 = vmatprep.subr.mxu0 0.0
    %278 = vmatpush2.msra.mxu0 0.0
    %279 = vmatprep.subr.mxu0 0.0
    %280 = vmatpush2.msra.mxu0 0.0
    %281 = vmatprep.subr.mxu0 0.0
    %282 = vmatpush2.msra.mxu0 0.0
    %283 = vmatprep.subr.mxu0 0.0
    %284 = vmatpush2.msra.mxu0 0.0
    %285 = vmatprep.subr.mxu0 0.0
    %286 = vmatpush2.msra.mxu0 0.0
    %287 = vmatprep.mubr.f32.mxu0 0.0
    %288 = vmatmul.mubr.f32.gmra.mxu0 %v143
    %v289 = vpop.f32.mrf.mxu0
    %v290 = vadd.f32 %v219, %v289
    %v291 = vpop.f32.mrf.mxu0
    %v292 = vadd.f32 %v221, %v291
    %293 = vdwg.mxu0
    %v294 = vstv %s37
    %v295 = vsub.f32 %v290, %v294
    %v296 = vsub.f32 %v292, %v294
    %v297 = vmax.f32 %v295, 0.0
    %v298 = vmax.f32 %v296, 0.0
    %v299 = vadd.f32 %v297, %v294
    %v300 = vadd.f32 %v298, %v294
    %v301 = vld [vmem:[%s2] sm:$0xff]
    %v302 = vld [vmem:[%s2 + $0x8] sm:$0xff]
    %v303 = vld [vmem:[%s2 + $0x10] sm:$0xff]
    %v304 = vld [vmem:[%s2 + $0x18] sm:$0xff]
    %v305 = vld [vmem:[%s2 + $0x20] sm:$0xff]
    %v306 = vld [vmem:[%s2 + $0x28] sm:$0xff]
    %v307 = vld [vmem:[%s2 + $0x30] sm:$0xff]
    %v308 = vld [vmem:[%s2 + $0x38] sm:$0xff]
    %v309 = vld [vmem:[%s2 + $0x40] sm:$0xff]
    %v310 = vld [vmem:[%s2 + $0x48] sm:$0xff]
    %v311 = vld [vmem:[%s2 + $0x50] sm:$0xff]
    %v312 = vld [vmem:[%s2 + $0x58] sm:$0xff]
    %v313 = vld [vmem:[%s2 + $0x60] sm:$0xff]
    %v314 = vld [vmem:[%s2 + $0x68] sm:$0xff]
    %v315 = vld [vmem:[%s2 + $0x70] sm:$0xff]
    %v316 = vld [vmem:[%s2 + $0x78] sm:$0xff]
    %v317 = vld [vmem:[%s2 + $0x80] sm:$0xff]
    %v318 = vld [vmem:[%s2 + $0x88] sm:$0xff]
    %v319 = vld [vmem:[%s2 + $0x90] sm:$0xff]
    %v320 = vld [vmem:[%s2 + $0x98] sm:$0xff]
    %v321 = vld [vmem:[%s2 + $0xa0] sm:$0xff]
    %v322 = vld [vmem:[%s2 + $0xa8] sm:$0xff]
    %v323 = vld [vmem:[%s2 + $0xb0] sm:$0xff]
    %v324 = vld [vmem:[%s2 + $0xb8] sm:$0xff]
    %v325 = vld [vmem:[%s2 + $0xc0] sm:$0xf]
    %v327 = vsel %vm142, %v300, 0
    %v330 = vsel %vm145, %v325, 0
    %332 = vmatprep.subr.mxu0 0.0
    %333 = vmatpush1.msra.mxu0 %v316
    %334 = vmatprep.subr.mxu0 0.0
    %335 = vmatpush1.msra.mxu0 %v315
    %336 = vmatprep.subr.mxu0 0.0
    %337 = vmatpush1.msra.mxu0 %v314
    %338 = vmatprep.subr.mxu0 0.0
    %339 = vmatpush1.msra.mxu0 %v313
    %340 = vmatprep.subr.mxu0 0.0
    %341 = vmatpush1.msra.mxu0 %v312
    %342 = vmatprep.subr.mxu0 0.0
    %343 = vmatpush1.msra.mxu0 %v311
    %344 = vmatprep.subr.mxu0 0.0
    %345 = vmatpush1.msra.mxu0 %v310
    %346 = vmatprep.subr.mxu0 0.0
    %347 = vmatpush1.msra.mxu0 %v309
    %348 = vmatprep.subr.mxu0 0.0
    %349 = vmatpush1.msra.mxu0 %v308
    %350 = vmatprep.subr.mxu0 0.0
    %351 = vmatpush1.msra.mxu0 %v307
    %352 = vmatprep.subr.mxu0 0.0
    %353 = vmatpush1.msra.mxu0 %v306
    %354 = vmatprep.subr.mxu0 0.0
    %355 = vmatpush1.msra.mxu0 %v305
    %356 = vmatprep.subr.mxu0 0.0
    %357 = vmatpush1.msra.mxu0 %v304
    %358 = vmatprep.subr.mxu0 0.0
    %359 = vmatpush1.msra.mxu0 %v303
    %360 = vmatprep.subr.mxu0 0.0
    %361 = vmatpush1.msra.mxu0 %v302
    %362 = vmatprep.subr.mxu0 0.0
    %363 = vmatpush1.msra.mxu0 %v301
    %364 = vmatprep.subr.mxu0 0.0
    %365 = vmatpush2.msra.mxu0 0.0
    %366 = vmatprep.subr.mxu0 0.0
    %367 = vmatpush2.msra.mxu0 0.0
    %368 = vmatprep.subr.mxu0 0.0
    %369 = vmatpush2.msra.mxu0 0.0
    %370 = vmatprep.subr.mxu0 0.0
    %371 = vmatpush2.msra.mxu0 0.0
    %372 = vmatprep.subr.mxu0 0.0
    %373 = vmatpush2.msra.mxu0 0.0
    %374 = vmatprep.subr.mxu0 0.0
    %375 = vmatpush2.msra.mxu0 0.0
    %376 = vmatprep.subr.mxu0 0.0
    %377 = vmatpush2.msra.mxu0 0.0
    %378 = vmatprep.subr.mxu0 0.0
    %379 = vmatpush2.msra.mxu0 %v330
    %380 = vmatprep.subr.mxu0 0.0
    %381 = vmatpush2.msra.mxu0 %v324
    %382 = vmatprep.subr.mxu0 0.0
    %383 = vmatpush2.msra.mxu0 %v323
    %384 = vmatprep.subr.mxu0 0.0
    %385 = vmatpush2.msra.mxu0 %v322
    %386 = vmatprep.subr.mxu0 0.0
    %387 = vmatpush2.msra.mxu0 %v321
    %388 = vmatprep.subr.mxu0 0.0
    %389 = vmatpush2.msra.mxu0 %v320
    %390 = vmatprep.subr.mxu0 0.0
    %391 = vmatpush2.msra.mxu0 %v319
    %392 = vmatprep.subr.mxu0 0.0
    %393 = vmatpush2.msra.mxu0 %v318
    %394 = vmatprep.subr.mxu0 0.0
    %395 = vmatpush2.msra.mxu0 %v317
    %396 = vmatprep.mubr.f32.mxu0 %v327
    %397 = vmatmul.mubr.f32.gmra.mxu0 %v299
    %v398 = vpop.f32.mrf.mxu0
    %v399 = vadd.f32 0.0, %v398
    %v400 = vpop.f32.mrf.mxu0
    %401 = vdwg.mxu0
    %v402 = vstv %s38
    %v403 = vsub.f32 %v399, %v402
    %v404 = vmax.f32 %v403, 0.0
    %v405 = vadd.f32 %v404, %v402
    %v406 = vld [vmem:[%s3] sm:$0xff]
    %v407 = vld [vmem:[%s3 + $0x8] sm:$0xff]
    %v408 = vld [vmem:[%s3 + $0x10] sm:$0xff]
    %v409 = vld [vmem:[%s3 + $0x18] sm:$0xff]
    %v410 = vld [vmem:[%s3 + $0x20] sm:$0xff]
    %v411 = vld [vmem:[%s3 + $0x28] sm:$0xff]
    %v412 = vld [vmem:[%s3 + $0x30] sm:$0xff]
    %v413 = vld [vmem:[%s3 + $0x38] sm:$0xff]
    %v414 = vld [vmem:[%s3 + $0x40] sm:$0xff]
    %v415 = vld [vmem:[%s3 + $0x48] sm:$0xff]
    %v416 = vld [vmem:[%s3 + $0x50] sm:$0xff]
    %v417 = vld [vmem:[%s3 + $0x58] sm:$0xff]
    %v418 = vld [vmem:[%s3 + $0x60] sm:$0xff]
    %v419 = vld [vmem:[%s3 + $0x68] sm:$0xff]
    %v420 = vld [vmem:[%s3 + $0x70] sm:$0xff]
    %v421 = vld [vmem:[%s3 + $0x78] sm:$0xff]
    %v422 = vld [vmem:[%s3 + $0x80] sm:$0xff]
    %v423 = vld [vmem:[%s3 + $0x88] sm:$0xff]
    %v424 = vld [vmem:[%s3 + $0x90] sm:$0xff]
    %v425 = vld [vmem:[%s3 + $0x98] sm:$0xff]
    %v426 = vld [vmem:[%s3 + $0xa0] sm:$0xff]
    %v427 = vld [vmem:[%s3 + $0xa8] sm:$0xff]
    %v428 = vld [vmem:[%s3 + $0xb0] sm:$0xff]
    %v429 = vld [vmem:[%s3 + $0xb8] sm:$0xff]
    %v430 = vld [vmem:[%s3 + $0xc0] sm:$0xff]
    %v431 = vld [vmem:[%s3 + $0xc8] sm:$0xff]
    %v432 = vld [vmem:[%s3 + $0xd0] sm:$0xff]
    %v433 = vld [vmem:[%s3 + $0xd8] sm:$0xff]
    %v434 = vld [vmem:[%s3 + $0xe0] sm:$0xff]
    %v435 = vld [vmem:[%s3 + $0xe8] sm:$0xff]
    %v436 = vld [vmem:[%s3 + $0xf0] sm:$0xff]
    %v437 = vld [vmem:[%s3 + $0xf8] sm:$0xff]
    %v438 = vld [vmem:[%s3 + $0x100] sm:$0xff]
    %v439 = vld [vmem:[%s3 + $0x108] sm:$0xff]
    %v440 = vld [vmem:[%s3 + $0x110] sm:$0xff]
    %v441 = vld [vmem:[%s3 + $0x118] sm:$0xff]
    %v442 = vld [vmem:[%s3 + $0x120] sm:$0xff]
    %v443 = vld [vmem:[%s3 + $0x128] sm:$0xff]
    %v444 = vld [vmem:[%s3 + $0x130] sm:$0xff]
    %v445 = vld [vmem:[%s3 + $0x138] sm:$0xff]
    %v446 = vld [vmem:[%s3 + $0x140] sm:$0xff]
    %v447 = vld [vmem:[%s3 + $0x148] sm:$0xff]
    %v448 = vld [vmem:[%s3 + $0x150] sm:$0xff]
    %v449 = vld [vmem:[%s3 + $0x158] sm:$0xff]
    %v450 = vld [vmem:[%s3 + $0x160] sm:$0xff]
    %v451 = vld [vmem:[%s3 + $0x168] sm:$0xff]
    %v452 = vld [vmem:[%s3 + $0x170] sm:$0xff]
    %v453 = vld [vmem:[%s3 + $0x178] sm:$0xff]
    %v454 = vld [vmem:[%s3 + $0x180] sm:$0xf]
    %v455 = vld [vmem:[%s3 + $0x188] sm:$0xf]
    %v456 = vld [vmem:[%s3 + $0x190] sm:$0xf]
    %v457 = vld [vmem:[%s3 + $0x198] sm:$0xf]
    %v458 = vld [vmem:[%s4] sm:$0xff]
    %v459 = vld [vmem:[%s4 + $0x8] sm:$0xff]
    %v460 = vld [vmem:[%s4 + $0x10] sm:$0xff]
    %v461 = vld [vmem:[%s4 + $0x18] sm:$0xff]
    %v462 = vld [vmem:[%s4 + $0x20] sm:$0xff]
    %v463 = vld [vmem:[%s4 + $0x28] sm:$0xff]
    %v464 = vld [vmem:[%s4 + $0x30] sm:$0xff]
    %v465 = vld [vmem:[%s4 + $0x38] sm:$0xff]
    %v466 = vld [vmem:[%s4 + $0x40] sm:$0xff]
    %v467 = vld [vmem:[%s4 + $0x48] sm:$0xff]
    %v468 = vld [vmem:[%s4 + $0x50] sm:$0xff]
    %v469 = vld [vmem:[%s4 + $0x58] sm:$0xff]
    %v470 = vld [vmem:[%s4 + $0x60] sm:$0xff]
    %v471 = vld [vmem:[%s4 + $0x68] sm:$0xff]
    %v472 = vld [vmem:[%s4 + $0x70] sm:$0xff]
    %v473 = vld [vmem:[%s4 + $0x78] sm:$0xff]
    %v474 = vld [vmem:[%s4 + $0x80] sm:$0xff]
    %v475 = vld [vmem:[%s4 + $0x88] sm:$0xff]
    %v476 = vld [vmem:[%s4 + $0x90] sm:$0xff]
    %v477 = vld [vmem:[%s4 + $0x98] sm:$0xff]
    %v478 = vld [vmem:[%s4 + $0xa0] sm:$0xff]
    %v479 = vld [vmem:[%s4 + $0xa8] sm:$0xff]
    %v480 = vld [vmem:[%s4 + $0xb0] sm:$0xff]
    %v481 = vld [vmem:[%s4 + $0xb8] sm:$0xff]
    %v482 = vld [vmem:[%s4 + $0xc0] sm:$0xff]
    %v483 = vld [vmem:[%s4 + $0xc8] sm:$0xff]
    %v484 = vld [vmem:[%s4 + $0xd0] sm:$0xff]
    %v485 = vld [vmem:[%s4 + $0xd8] sm:$0xff]
    %v486 = vld [vmem:[%s4 + $0xe0] sm:$0xff]
    %v487 = vld [vmem:[%s4 + $0xe8] sm:$0xff]
    %v488 = vld [vmem:[%s4 + $0xf0] sm:$0xff]
    %v489 = vld [vmem:[%s4 + $0xf8] sm:$0xff]
    %v490 = vld [vmem:[%s4 + $0x100] sm:$0xff]
    %v491 = vld [vmem:[%s4 + $0x108] sm:$0xff]
    %v492 = vld [vmem:[%s4 + $0x110] sm:$0xff]
    %v493 = vld [vmem:[%s4 + $0x118] sm:$0xff]
    %v494 = vld [vmem:[%s4 + $0x120] sm:$0xff]
    %v495 = vld [vmem:[%s4 + $0x128] sm:$0xff]
    %v496 = vld [vmem:[%s4 + $0x130] sm:$0xff]
    %v497 = vld [vmem:[%s4 + $0x138] sm:$0xff]
    %v498 = vld [vmem:[%s4 + $0x140] sm:$0xff]
    %v499 = vld [vmem:[%s4 + $0x148] sm:$0xff]
    %v500 = vld [vmem:[%s4 + $0x150] sm:$0xff]
    %v501 = vld [vmem:[%s4 + $0x158] sm:$0xff]
    %v502 = vld [vmem:[%s4 + $0x160] sm:$0xff]
    %v503 = vld [vmem:[%s4 + $0x168] sm:$0xff]
    %v504 = vld [vmem:[%s4 + $0x170] sm:$0xff]
    %v505 = vld [vmem:[%s4 + $0x178] sm:$0xff]
    %v506 = vld [vmem:[%s4 + $0x180] sm:$0xff]
    %v507 = vld [vmem:[%s4 + $0x188] sm:$0xff]
    %v508 = vld [vmem:[%s4 + $0x190] sm:$0xff]
    %v509 = vld [vmem:[%s4 + $0x198] sm:$0xff]
    %v510 = vld [vmem:[%s4 + $0x1a0] sm:$0xff]
    %v511 = vld [vmem:[%s4 + $0x1a8] sm:$0xff]
    %v512 = vld [vmem:[%s4 + $0x1b0] sm:$0xff]
    %v513 = vld [vmem:[%s4 + $0x1b8] sm:$0xff]
    %v514 = vld [vmem:[%s4 + $0x1c0] sm:$0xff]
    %v515 = vld [vmem:[%s4 + $0x1c8] sm:$0xff]
    %v516 = vld [vmem:[%s4 + $0x1d0] sm:$0xff]
    %v517 = vld [vmem:[%s4 + $0x1d8] sm:$0xff]
    %v518 = vld [vmem:[%s4 + $0x1e0] sm:$0xff]
    %v519 = vld [vmem:[%s4 + $0x1e8] sm:$0xff]
    %v520 = vld [vmem:[%s4 + $0x1f0] sm:$0xff]
    %v521 = vld [vmem:[%s4 + $0x1f8] sm:$0xff]
    %v522 = vld [vmem:[%s4 + $0x200] sm:$0xff]
    %v523 = vld [vmem:[%s4 + $0x208] sm:$0xff]
    %v524 = vld [vmem:[%s4 + $0x210] sm:$0xff]
    %v525 = vld [vmem:[%s4 + $0x218] sm:$0xff]
    %v526 = vld [vmem:[%s4 + $0x220] sm:$0xff]
    %v527 = vld [vmem:[%s4 + $0x228] sm:$0xff]
    %v528 = vld [vmem:[%s4 + $0x230] sm:$0xff]
    %v529 = vld [vmem:[%s4 + $0x238] sm:$0xff]
    %v530 = vld [vmem:[%s4 + $0x240] sm:$0xff]
    %v531 = vld [vmem:[%s4 + $0x248] sm:$0xff]
    %v532 = vld [vmem:[%s4 + $0x250] sm:$0xff]
    %v533 = vld [vmem:[%s4 + $0x258] sm:$0xff]
    %v534 = vld [vmem:[%s4 + $0x260] sm:$0xff]
    %v535 = vld [vmem:[%s4 + $0x268] sm:$0xff]
    %v536 = vld [vmem:[%s4 + $0x270] sm:$0xff]
    %v537 = vld [vmem:[%s4 + $0x278] sm:$0xff]
    %v538 = vld [vmem:[%s4 + $0x280] sm:$0xff]
    %v539 = vld [vmem:[%s4 + $0x288] sm:$0xff]
    %v540 = vld [vmem:[%s4 + $0x290] sm:$0xff]
    %v541 = vld [vmem:[%s4 + $0x298] sm:$0xff]
    %v542 = vld [vmem:[%s4 + $0x2a0] sm:$0xff]
    %v543 = vld [vmem:[%s4 + $0x2a8] sm:$0xff]
    %v544 = vld [vmem:[%s4 + $0x2b0] sm:$0xff]
    %v545 = vld [vmem:[%s4 + $0x2b8] sm:$0xff]
    %v546 = vld [vmem:[%s4 + $0x2c0] sm:$0xff]
    %v547 = vld [vmem:[%s4 + $0x2c8] sm:$0xff]
    %v548 = vld [vmem:[%s4 + $0x2d0] sm:$0xff]
    %v549 = vld [vmem:[%s4 + $0x2d8] sm:$0xff]
    %v550 = vld [vmem:[%s4 + $0x2e0] sm:$0xff]
    %v551 = vld [vmem:[%s4 + $0x2e8] sm:$0xff]
    %v552 = vld [vmem:[%s4 + $0x2f0] sm:$0xff]
    %v553 = vld [vmem:[%s4 + $0x2f8] sm:$0xff]
    %v554 = vld [vmem:[%s4 + $0x300] sm:$0xff]
    %v555 = vld [vmem:[%s4 + $0x308] sm:$0xff]
    %v556 = vld [vmem:[%s4 + $0x310] sm:$0xff]
    %v557 = vld [vmem:[%s4 + $0x318] sm:$0xff]
    %v558 = vld [vmem:[%s4 + $0x320] sm:$0xff]
    %v559 = vld [vmem:[%s4 + $0x328] sm:$0xff]
    %v560 = vld [vmem:[%s4 + $0x330] sm:$0xff]
    %v561 = vld [vmem:[%s4 + $0x338] sm:$0xff]
    %v562 = vld [vmem:[%s4 + $0x340] sm:$0xff]
    %v563 = vld [vmem:[%s4 + $0x348] sm:$0xff]
    %v564 = vld [vmem:[%s4 + $0x350] sm:$0xff]
    %v565 = vld [vmem:[%s4 + $0x358] sm:$0xff]
    %v566 = vld [vmem:[%s4 + $0x360] sm:$0xff]
    %v567 = vld [vmem:[%s4 + $0x368] sm:$0xff]
    %v568 = vld [vmem:[%s4 + $0x370] sm:$0xff]
    %v569 = vld [vmem:[%s4 + $0x378] sm:$0xff]
    %v570 = vld [vmem:[%s4 + $0x380] sm:$0xff]
    %v571 = vld [vmem:[%s4 + $0x388] sm:$0xff]
    %v572 = vld [vmem:[%s4 + $0x390] sm:$0xff]
    %v573 = vld [vmem:[%s4 + $0x398] sm:$0xff]
    %v574 = vld [vmem:[%s4 + $0x3a0] sm:$0xff]
    %v575 = vld [vmem:[%s4 + $0x3a8] sm:$0xff]
    %v576 = vld [vmem:[%s4 + $0x3b0] sm:$0xff]
    %v577 = vld [vmem:[%s4 + $0x3b8] sm:$0xff]
    %v578 = vld [vmem:[%s4 + $0x3c0] sm:$0xff]
    %v579 = vld [vmem:[%s4 + $0x3c8] sm:$0xff]
    %v580 = vld [vmem:[%s4 + $0x3d0] sm:$0xff]
    %v581 = vld [vmem:[%s4 + $0x3d8] sm:$0xff]
    %v582 = vld [vmem:[%s4 + $0x3e0] sm:$0xff]
    %v583 = vld [vmem:[%s4 + $0x3e8] sm:$0xff]
    %v584 = vld [vmem:[%s4 + $0x3f0] sm:$0xff]
    %v585 = vld [vmem:[%s4 + $0x3f8] sm:$0xff]
    %v586 = vld [vmem:[%s4 + $0x400] sm:$0xff]
    %v587 = vld [vmem:[%s4 + $0x408] sm:$0xff]
    %v588 = vld [vmem:[%s4 + $0x410] sm:$0xff]
    %v589 = vld [vmem:[%s4 + $0x418] sm:$0xff]
    %v590 = vld [vmem:[%s4 + $0x420] sm:$0xff]
    %v591 = vld [vmem:[%s4 + $0x428] sm:$0xff]
    %v592 = vld [vmem:[%s4 + $0x430] sm:$0xff]
    %v593 = vld [vmem:[%s4 + $0x438] sm:$0xff]
    %v594 = vld [vmem:[%s4 + $0x440] sm:$0xff]
    %v595 = vld [vmem:[%s4 + $0x448] sm:$0xff]
    %v596 = vld [vmem:[%s4 + $0x450] sm:$0xff]
    %v597 = vld [vmem:[%s4 + $0x458] sm:$0xff]
    %v598 = vld [vmem:[%s4 + $0x460] sm:$0xff]
    %v599 = vld [vmem:[%s4 + $0x468] sm:$0xff]
    %v600 = vld [vmem:[%s4 + $0x470] sm:$0xff]
    %v601 = vld [vmem:[%s4 + $0x478] sm:$0xff]
    %v602 = vld [vmem:[%s4 + $0x480] sm:$0xff]
    %v603 = vld [vmem:[%s4 + $0x488] sm:$0xff]
    %v604 = vld [vmem:[%s4 + $0x490] sm:$0xff]
    %v605 = vld [vmem:[%s4 + $0x498] sm:$0xff]
    %v606 = vld [vmem:[%s4 + $0x4a0] sm:$0xff]
    %v607 = vld [vmem:[%s4 + $0x4a8] sm:$0xff]
    %v608 = vld [vmem:[%s4 + $0x4b0] sm:$0xff]
    %v609 = vld [vmem:[%s4 + $0x4b8] sm:$0xff]
    %v610 = vld [vmem:[%s4 + $0x4c0] sm:$0xff]
    %v611 = vld [vmem:[%s4 + $0x4c8] sm:$0xff]
    %v612 = vld [vmem:[%s4 + $0x4d0] sm:$0xff]
    %v613 = vld [vmem:[%s4 + $0x4d8] sm:$0xff]
    %v614 = vld [vmem:[%s4 + $0x4e0] sm:$0xff]
    %v615 = vld [vmem:[%s4 + $0x4e8] sm:$0xff]
    %v616 = vld [vmem:[%s4 + $0x4f0] sm:$0xff]
    %v617 = vld [vmem:[%s4 + $0x4f8] sm:$0xff]
    %v618 = vld [vmem:[%s4 + $0x500] sm:$0xf]
    %v619 = vld [vmem:[%s4 + $0x508] sm:$0xf]
    %v620 = vld [vmem:[%s4 + $0x510] sm:$0xf]
    %v621 = vld [vmem:[%s4 + $0x518] sm:$0xf]
    %v623 = vsel %vm145, %v618, 0
    %v626 = vsel %vm145, %v619, 0
    %v629 = vsel %vm145, %v620, 0
    %v632 = vsel %vm145, %v621, 0
    %634 = vmatprep.subr.mxu0 %v519
    %635 = vmatpush1.msra.mxu0 %v518
    %636 = vmatprep.subr.mxu0 %v515
    %637 = vmatpush1.msra.mxu0 %v514
    %638 = vmatprep.subr.mxu0 %v511
    %639 = vmatpush1.msra.mxu0 %v510
    %640 = vmatprep.subr.mxu0 %v507
    %641 = vmatpush1.msra.mxu0 %v506
    %642 = vmatprep.subr.mxu0 %v503
    %643 = vmatpush1.msra.mxu0 %v502
    %644 = vmatprep.subr.mxu0 %v499
    %645 = vmatpush1.msra.mxu0 %v498
    %646 = vmatprep.subr.mxu0 %v495
    %647 = vmatpush1.msra.mxu0 %v494
    %648 = vmatprep.subr.mxu0 %v491
    %649 = vmatpush1.msra.mxu0 %v490
    %650 = vmatprep.subr.mxu0 %v487
    %651 = vmatpush1.msra.mxu0 %v486
    %652 = vmatprep.subr.mxu0 %v483
    %653 = vmatpush1.msra.mxu0 %v482
    %654 = vmatprep.subr.mxu0 %v479
    %655 = vmatpush1.msra.mxu0 %v478
    %656 = vmatprep.subr.mxu0 %v475
    %657 = vmatpush1.msra.mxu0 %v474
    %658 = vmatprep.subr.mxu0 %v471
    %659 = vmatpush1.msra.mxu0 %v470
    %660 = vmatprep.subr.mxu0 %v467
    %661 = vmatpush1.msra.mxu0 %v466
    %662 = vmatprep.subr.mxu0 %v463
    %663 = vmatpush1.msra.mxu0 %v462
    %664 = vmatprep.subr.mxu0 %v459
    %665 = vmatpush1.msra.mxu0 %v458
    %666 = vmatprep.subr.mxu0 %v583
    %667 = vmatpush2.msra.mxu0 %v582
    %668 = vmatprep.subr.mxu0 %v579
    %669 = vmatpush2.msra.mxu0 %v578
    %670 = vmatprep.subr.mxu0 %v575
    %671 = vmatpush2.msra.mxu0 %v574
    %672 = vmatprep.subr.mxu0 %v571
    %673 = vmatpush2.msra.mxu0 %v570
    %674 = vmatprep.subr.mxu0 %v567
    %675 = vmatpush2.msra.mxu0 %v566
    %676 = vmatprep.subr.mxu0 %v563
    %677 = vmatpush2.msra.mxu0 %v562
    %678 = vmatprep.subr.mxu0 %v559
    %679 = vmatpush2.msra.mxu0 %v558
    %680 = vmatprep.subr.mxu0 %v555
    %681 = vmatpush2.msra.mxu0 %v554
    %682 = vmatprep.subr.mxu0 %v551
    %683 = vmatpush2.msra.mxu0 %v550
    %684 = vmatprep.subr.mxu0 %v547
    %685 = vmatpush2.msra.mxu0 %v546
    %686 = vmatprep.subr.mxu0 %v543
    %687 = vmatpush2.msra.mxu0 %v542
    %688 = vmatprep.subr.mxu0 %v539
    %689 = vmatpush2.msra.mxu0 %v538
    %690 = vmatprep.subr.mxu0 %v535
    %691 = vmatpush2.msra.mxu0 %v534
    %692 = vmatprep.subr.mxu0 %v531
    %693 = vmatpush2.msra.mxu0 %v530
    %694 = vmatprep.subr.mxu0 %v527
    %695 = vmatpush2.msra.mxu0 %v526
    %696 = vmatprep.subr.mxu0 %v523
    %697 = vmatpush2.msra.mxu0 %v522
    %698 = vmatprep.mubr.f32.mxu0 %v139
    %699 = vmatmul.mubr.f32.gmra.mxu0 %v131
    %v700 = vpop.f32.mrf.mxu0
    %v701 = vadd.f32 0.0, %v700
    %v702 = vpop.f32.mrf.mxu0
    %v703 = vadd.f32 0.0, %v702
    %704 = vdwg.mxu0
    %705 = vmatprep.subr.mxu0 0.0
    %706 = vmatpush1.msra.mxu0 0.0
    %707 = vmatprep.subr.mxu0 0.0
    %708 = vmatpush1.msra.mxu0 0.0
    %709 = vmatprep.subr.mxu0 0.0
    %710 = vmatpush1.msra.mxu0 0.0
    %711 = vmatprep.subr.mxu0 0.0
    %712 = vmatpush1.msra.mxu0 0.0
    %713 = vmatprep.subr.mxu0 0.0
    %714 = vmatpush1.msra.mxu0 0.0
    %715 = vmatprep.subr.mxu0 0.0
    %716 = vmatpush1.msra.mxu0 0.0
    %717 = vmatprep.subr.mxu0 0.0
    %718 = vmatpush1.msra.mxu0 0.0
    %719 = vmatprep.subr.mxu0 %v626
    %720 = vmatpush1.msra.mxu0 %v623
    %721 = vmatprep.subr.mxu0 %v615
    %722 = vmatpush1.msra.mxu0 %v614
    %723 = vmatprep.subr.mxu0 %v611
    %724 = vmatpush1.msra.mxu0 %v610
    %725 = vmatprep.subr.mxu0 %v607
    %726 = vmatpush1.msra.mxu0 %v606
    %727 = vmatprep.subr.mxu0 %v603
    %728 = vmatpush1.msra.mxu0 %v602
    %729 = vmatprep.subr.mxu0 %v599
    %730 = vmatpush1.msra.mxu0 %v598
    %731 = vmatprep.subr.mxu0 %v595
    %732 = vmatpush1.msra.mxu0 %v594
    %733 = vmatprep.subr.mxu0 %v591
    %734 = vmatpush1.msra.mxu0 %v590
    %735 = vmatprep.subr.mxu0 %v587
    %736 = vmatpush1.msra.mxu0 %v586
    %737 = vmatprep.subr.mxu0 0.0
    %738 = vmatpush2.msra.mxu0 0.0
    %739 = vmatprep.subr.mxu0 0.0
    %740 = vmatpush2.msra.mxu0 0.0
    %741 = vmatprep.subr.mxu0 0.0
    %742 = vmatpush2.msra.mxu0 0.0
    %743 = vmatprep.subr.mxu0 0.0
    %744 = vmatpush2.msra.mxu0 0.0
    %745 = vmatprep.subr.mxu0 0.0
    %746 = vmatpush2.msra.mxu0 0.0
    %747 = vmatprep.subr.mxu0 0.0
    %748 = vmatpush2.msra.mxu0 0.0
    %749 = vmatprep.subr.mxu0 0.0
    %750 = vmatpush2.msra.mxu0 0.0
    %751 = vmatprep.subr.mxu0 0.0
    %752 = vmatpush2.msra.mxu0 0.0
    %753 = vmatprep.subr.mxu0 0.0
    %754 = vmatpush2.msra.mxu0 0.0
    %755 = vmatprep.subr.mxu0 0.0
    %756 = vmatpush2.msra.mxu0 0.0
    %757 = vmatprep.subr.mxu0 0.0
    %758 = vmatpush2.msra.mxu0 0.0
    %759 = vmatprep.subr.mxu0 0.0
    %760 = vmatpush2.msra.mxu0 0.0
    %761 = vmatprep.subr.mxu0 0.0
    %762 = vmatpush2.msra.mxu0 0.0
    %763 = vmatprep.subr.mxu0 0.0
    %764 = vmatpush2.msra.mxu0 0.0
    %765 = vmatprep.subr.mxu0 0.0
    %766 = vmatpush2.msra.mxu0 0.0
    %767 = vmatprep.subr.mxu0 0.0
    %768 = vmatpush2.msra.mxu0 0.0
    %769 = vmatprep.mubr.f32.mxu0 0.0
    %770 = vmatmul.mubr.f32.gmra.mxu0 %v143
    %v771 = vpop.f32.mrf.mxu0
    %v772 = vadd.f32 %v701, %v771
    %v773 = vpop.f32.mrf.mxu0
    %v774 = vadd.f32 %v703, %v773
    %775 = vdwg.mxu0
    %776 = vmatprep.subr.mxu0 %v521
    %777 = vmatpush1.msra.mxu0 %v520
    %778 = vmatprep.subr.mxu0 %v517
    %779 = vmatpush1.msra.mxu0 %v516
    %780 = vmatprep.subr.mxu0 %v513
    %781 = vmatpush1.msra.mxu0 %v512
    %782 = vmatprep.subr.mxu0 %v509
    %783 = vmatpush1.msra.mxu0 %v508
    %784 = vmatprep.subr.mxu0 %v505
    %785 = vmatpush1.msra.mxu0 %v504
    %786 = vmatprep.subr.mxu0 %v501
    %787 = vmatpush1.msra.mxu0 %v500
    %788 = vmatprep.subr.mxu0 %v497
    %789 = vmatpush1.msra.mxu0 %v496
    %790 = vmatprep.subr.mxu0 %v493
    %791 = vmatpush1.msra.mxu0 %v492
    %792 = vmatprep.subr.mxu0 %v489
    %793 = vmatpush1.msra.mxu0 %v488
    %794 = vmatprep.subr.mxu0 %v485
    %795 = vmatpush1.msra.mxu0 %v484
    %796 = vmatprep.subr.mxu0 %v481
    %797 = vmatpush1.msra.mxu0 %v480
    %798 = vmatprep.subr.mxu0 %v477
    %799 = vmatpush1.msra.mxu0 %v476
    %800 = vmatprep.subr.mxu0 %v473
    %801 = vmatpush1.msra.mxu0 %v472
    %802 = vmatprep.subr.mxu0 %v469
    %803 = vmatpush1.msra.mxu0 %v468
    %804 = vmatprep.subr.mxu0 %v465
    %805 = vmatpush1.msra.mxu0 %v464
    %806 = vmatprep.subr.mxu0 %v461
    %807 = vmatpush1.msra.mxu0 %v460
    %808 = vmatprep.subr.mxu0 %v585
    %809 = vmatpush2.msra.mxu0 %v584
    %810 = vmatprep.subr.mxu0 %v581
    %811 = vmatpush2.msra.mxu0 %v580
    %812 = vmatprep.subr.mxu0 %v577
    %813 = vmatpush2.msra.mxu0 %v576
    %814 = vmatprep.subr.mxu0 %v573
    %815 = vmatpush2.msra.mxu0 %v572
    %816 = vmatprep.subr.mxu0 %v569
    %817 = vmatpush2.msra.mxu0 %v568
    %818 = vmatprep.subr.mxu0 %v565
    %819 = vmatpush2.msra.mxu0 %v564
    %820 = vmatprep.subr.mxu0 %v561
    %821 = vmatpush2.msra.mxu0 %v560
    %822 = vmatprep.subr.mxu0 %v557
    %823 = vmatpush2.msra.mxu0 %v556
    %824 = vmatprep.subr.mxu0 %v553
    %825 = vmatpush2.msra.mxu0 %v552
    %826 = vmatprep.subr.mxu0 %v549
    %827 = vmatpush2.msra.mxu0 %v548
    %828 = vmatprep.subr.mxu0 %v545
    %829 = vmatpush2.msra.mxu0 %v544
    %830 = vmatprep.subr.mxu0 %v541
    %831 = vmatpush2.msra.mxu0 %v540
    %832 = vmatprep.subr.mxu0 %v537
    %833 = vmatpush2.msra.mxu0 %v536
    %834 = vmatprep.subr.mxu0 %v533
    %835 = vmatpush2.msra.mxu0 %v532
    %836 = vmatprep.subr.mxu0 %v529
    %837 = vmatpush2.msra.mxu0 %v528
    %838 = vmatprep.subr.mxu0 %v525
    %839 = vmatpush2.msra.mxu0 %v524
    %840 = vmatprep.mubr.f32.mxu0 %v139
    %841 = vmatmul.mubr.f32.gmra.mxu0 %v131
    %v842 = vpop.f32.mrf.mxu0
    %v843 = vadd.f32 0.0, %v842
    %v844 = vpop.f32.mrf.mxu0
    %v845 = vadd.f32 0.0, %v844
    %846 = vdwg.mxu0
    %847 = vmatprep.subr.mxu0 0.0
    %848 = vmatpush1.msra.mxu0 0.0
    %849 = vmatprep.subr.mxu0 0.0
    %850 = vmatpush1.msra.mxu0 0.0
    %851 = vmatprep.subr.mxu0 0.0
    %852 = vmatpush1.msra.mxu0 0.0
    %853 = vmatprep.subr.mxu0 0.0
    %854 = vmatpush1.msra.mxu0 0.0
    %855 = vmatprep.subr.mxu0 0.0
    %856 = vmatpush1.msra.mxu0 0.0
    %857 = vmatprep.subr.mxu0 0.0
    %858 = vmatpush1.msra.mxu0 0.0
    %859 = vmatprep.subr.mxu0 0.0
    %860 = vmatpush1.msra.mxu0 0.0
    %861 = vmatprep.subr.mxu0 %v632
    %862 = vmatpush1.msra.mxu0 %v629
    %863 = vmatprep.subr.mxu0 %v617
    %864 = vmatpush1.msra.mxu0 %v616
    %865 = vmatprep.subr.mxu0 %v613
    %866 = vmatpush1.msra.mxu0 %v612
    %867 = vmatprep.subr.mxu0 %v609
    %868 = vmatpush1.msra.mxu0 %v608
    %869 = vmatprep.subr.mxu0 %v605
    %870 = vmatpush1.msra.mxu0 %v604
    %871 = vmatprep.subr.mxu0 %v601
    %872 = vmatpush1.msra.mxu0 %v600
    %873 = vmatprep.subr.mxu0 %v597
    %874 = vmatpush1.msra.mxu0 %v596
    %875 = vmatprep.subr.mxu0 %v593
    %876 = vmatpush1.msra.mxu0 %v592
    %877 = vmatprep.subr.mxu0 %v589
    %878 = vmatpush1.msra.mxu0 %v588
    %879 = vmatprep.subr.mxu0 0.0
    %880 = vmatpush2.msra.mxu0 0.0
    %881 = vmatprep.subr.mxu0 0.0
    %882 = vmatpush2.msra.mxu0 0.0
    %883 = vmatprep.subr.mxu0 0.0
    %884 = vmatpush2.msra.mxu0 0.0
    %885 = vmatprep.subr.mxu0 0.0
    %886 = vmatpush2.msra.mxu0 0.0
    %887 = vmatprep.subr.mxu0 0.0
    %888 = vmatpush2.msra.mxu0 0.0
    %889 = vmatprep.subr.mxu0 0.0
    %890 = vmatpush2.msra.mxu0 0.0
    %891 = vmatprep.subr.mxu0 0.0
    %892 = vmatpush2.msra.mxu0 0.0
    %893 = vmatprep.subr.mxu0 0.0
    %894 = vmatpush2.msra.mxu0 0.0
    %895 = vmatprep.subr.mxu0 0.0
    %896 = vmatpush2.msra.mxu0 0.0
    %897 = vmatprep.subr.mxu0 0.0
    %898 = vmatpush2.msra.mxu0 0.0
    %899 = vmatprep.subr.mxu0 0.0
    %900 = vmatpush2.msra.mxu0 0.0
    %901 = vmatprep.subr.mxu0 0.0
    %902 = vmatpush2.msra.mxu0 0.0
    %903 = vmatprep.subr.mxu0 0.0
    %904 = vmatpush2.msra.mxu0 0.0
    %905 = vmatprep.subr.mxu0 0.0
    %906 = vmatpush2.msra.mxu0 0.0
    %907 = vmatprep.subr.mxu0 0.0
    %908 = vmatpush2.msra.mxu0 0.0
    %909 = vmatprep.subr.mxu0 0.0
    %910 = vmatpush2.msra.mxu0 0.0
    %911 = vmatprep.mubr.f32.mxu0 0.0
    %912 = vmatmul.mubr.f32.gmra.mxu0 %v143
    %v913 = vpop.f32.mrf.mxu0
    %v914 = vadd.f32 %v843, %v913
    %v915 = vpop.f32.mrf.mxu0
    %v916 = vadd.f32 %v845, %v915
    %917 = vdwg.mxu0
    %vm918 = vcmask 818176
    %v920 = vsel %vm918, %v405, 0
    %v923 = vsel %vm145, %v454, 0
    %v926 = vsel %vm145, %v455, 0
    %v929 = vsel %vm145, %v456, 0
    %v932 = vsel %vm145, %v457, 0
    %934 = vmatprep.subr.mxu0 0.0
    %935 = vmatpush1.msra.mxu0 0.0
    %936 = vmatprep.subr.mxu0 0.0
    %937 = vmatpush1.msra.mxu0 0.0
    %938 = vmatprep.subr.mxu0 0.0
    %939 = vmatpush1.msra.mxu0 0.0
    %940 = vmatprep.subr.mxu0 %v926
    %941 = vmatpush1.msra.mxu0 %v923
    %942 = vmatprep.subr.mxu0 %v451
    %943 = vmatpush1.msra.mxu0 %v450
    %944 = vmatprep.subr.mxu0 %v447
    %945 = vmatpush1.msra.mxu0 %v446
    %946 = vmatprep.subr.mxu0 %v443
    %947 = vmatpush1.msra.mxu0 %v442
    %948 = vmatprep.subr.mxu0 %v439
    %949 = vmatpush1.msra.mxu0 %v438
    %950 = vmatprep.subr.mxu0 %v435
    %951 = vmatpush1.msra.mxu0 %v434
    %952 = vmatprep.subr.mxu0 %v431
    %953 = vmatpush1.msra.mxu0 %v430
    %954 = vmatprep.subr.mxu0 %v427
    %955 = vmatpush1.msra.mxu0 %v426
    %956 = vmatprep.subr.mxu0 %v423
    %957 = vmatpush1.msra.mxu0 %v422
    %958 = vmatprep.subr.mxu0 %v419
    %959 = vmatpush1.msra.mxu0 %v418
    %960 = vmatprep.subr.mxu0 %v415
    %961 = vmatpush1.msra.mxu0 %v414
    %962 = vmatprep.subr.mxu0 %v411
    %963 = vmatpush1.msra.mxu0 %v410
    %964 = vmatprep.subr.mxu0 %v407
    %965 = vmatpush1.msra.mxu0 %v406
    %966 = vmatprep.subr.mxu0 0.0
    %967 = vmatpush2.msra.mxu0 0.0
    %968 = vmatprep.subr.mxu0 0.0
    %969 = vmatpush2.msra.mxu0 0.0
    %970 = vmatprep.subr.mxu0 0.0
    %971 = vmatpush2.msra.mxu0 0.0
    %972 = vmatprep.subr.mxu0 0.0
    %973 = vmatpush2.msra.mxu0 0.0
    %974 = vmatprep.subr.mxu0 0.0
    %975 = vmatpush2.msra.mxu0 0.0
    %976 = vmatprep.subr.mxu0 0.0
    %977 = vmatpush2.msra.mxu0 0.0
    %978 = vmatprep.subr.mxu0 0.0
    %979 = vmatpush2.msra.mxu0 0.0
    %980 = vmatprep.subr.mxu0 0.0
    %981 = vmatpush2.msra.mxu0 0.0
    %982 = vmatprep.subr.mxu0 0.0
    %983 = vmatpush2.msra.mxu0 0.0
    %984 = vmatprep.subr.mxu0 0.0
    %985 = vmatpush2.msra.mxu0 0.0
    %986 = vmatprep.subr.mxu0 0.0
    %987 = vmatpush2.msra.mxu0 0.0
    %988 = vmatprep.subr.mxu0 0.0
    %989 = vmatpush2.msra.mxu0 0.0
    %990 = vmatprep.subr.mxu0 0.0
    %991 = vmatpush2.msra.mxu0 0.0
    %992 = vmatprep.subr.mxu0 0.0
    %993 = vmatpush2.msra.mxu0 0.0
    %994 = vmatprep.subr.mxu0 0.0
    %995 = vmatpush2.msra.mxu0 0.0
    %996 = vmatprep.subr.mxu0 0.0
    %997 = vmatpush2.msra.mxu0 0.0
    %998 = vmatprep.mubr.f32.mxu0 0.0
    %999 = vmatmul.mubr.f32.gmra.mxu0 %v920
    %v1000 = vpop.f32.mrf.mxu0
    %v1001 = vadd.f32 %v772, %v1000
    %v1002 = vpop.f32.mrf.mxu0
    %v1003 = vadd.f32 %v774, %v1002
    %1004 = vdwg.mxu0
    %1005 = vmatprep.subr.mxu0 0.0
    %1006 = vmatpush1.msra.mxu0 0.0
    %1007 = vmatprep.subr.mxu0 0.0
    %1008 = vmatpush1.msra.mxu0 0.0
    %1009 = vmatprep.subr.mxu0 0.0
    %1010 = vmatpush1.msra.mxu0 0.0
    %1011 = vmatprep.subr.mxu0 %v932
    %1012 = vmatpush1.msra.mxu0 %v929
    %1013 = vmatprep.subr.mxu0 %v453
    %1014 = vmatpush1.msra.mxu0 %v452
    %1015 = vmatprep.subr.mxu0 %v449
    %1016 = vmatpush1.msra.mxu0 %v448
    %1017 = vmatprep.subr.mxu0 %v445
    %1018 = vmatpush1.msra.mxu0 %v444
    %1019 = vmatprep.subr.mxu0 %v441
    %1020 = vmatpush1.msra.mxu0 %v440
    %1021 = vmatprep.subr.mxu0 %v437
    %1022 = vmatpush1.msra.mxu0 %v436
    %1023 = vmatprep.subr.mxu0 %v433
    %1024 = vmatpush1.msra.mxu0 %v432
    %1025 = vmatprep.subr.mxu0 %v429
    %1026 = vmatpush1.msra.mxu0 %v428
    %1027 = vmatprep.subr.mxu0 %v425
    %1028 = vmatpush1.msra.mxu0 %v424
    %1029 = vmatprep.subr.mxu0 %v421
    %1030 = vmatpush1.msra.mxu0 %v420
    %1031 = vmatprep.subr.mxu0 %v417
    %1032 = vmatpush1.msra.mxu0 %v416
    %1033 = vmatprep.subr.mxu0 %v413
    %1034 = vmatpush1.msra.mxu0 %v412
    %1035 = vmatprep.subr.mxu0 %v409
    %1036 = vmatpush1.msra.mxu0 %v408
    %1037 = vmatprep.subr.mxu0 0.0
    %1038 = vmatpush2.msra.mxu0 0.0
    %1039 = vmatprep.subr.mxu0 0.0
    %1040 = vmatpush2.msra.mxu0 0.0
    %1041 = vmatprep.subr.mxu0 0.0
    %1042 = vmatpush2.msra.mxu0 0.0
    %1043 = vmatprep.subr.mxu0 0.0
    %1044 = vmatpush2.msra.mxu0 0.0
    %1045 = vmatprep.subr.mxu0 0.0
    %1046 = vmatpush2.msra.mxu0 0.0
    %1047 = vmatprep.subr.mxu0 0.0
    %1048 = vmatpush2.msra.mxu0 0.0
    %1049 = vmatprep.subr.mxu0 0.0
    %1050 = vmatpush2.msra.mxu0 0.0
    %1051 = vmatprep.subr.mxu0 0.0
    %1052 = vmatpush2.msra.mxu0 0.0
    %1053 = vmatprep.subr.mxu0 0.0
    %1054 = vmatpush2.msra.mxu0 0.0
    %1055 = vmatprep.subr.mxu0 0.0
    %1056 = vmatpush2.msra.mxu0 0.0
    %1057 = vmatprep.subr.mxu0 0.0
    %1058 = vmatpush2.msra.mxu0 0.0
    %1059 = vmatprep.subr.mxu0 0.0
    %1060 = vmatpush2.msra.mxu0 0.0
    %1061 = vmatprep.subr.mxu0 0.0
    %1062 = vmatpush2.msra.mxu0 0.0
    %1063 = vmatprep.subr.mxu0 0.0
    %1064 = vmatpush2.msra.mxu0 0.0
    %1065 = vmatprep.subr.mxu0 0.0
    %1066 = vmatpush2.msra.mxu0 0.0
    %1067 = vmatprep.subr.mxu0 0.0
    %1068 = vmatpush2.msra.mxu0 0.0
    %1069 = vmatprep.mubr.f32.mxu0 0.0
    %1070 = vmatmul.mubr.f32.gmra.mxu0 %v920
    %v1071 = vpop.f32.mrf.mxu0
    %v1072 = vadd.f32 %v914, %v1071
    %v1073 = vpop.f32.mrf.mxu0
    %v1074 = vadd.f32 %v916, %v1073
    %1075 = vdwg.mxu0
    %v1076 = vstv %s39
    %v1077 = vsub.f32 %v1001, %v1076
    %v1078 = vsub.f32 %v1003, %v1076
    %v1079 = vsub.f32 %v1072, %v1076
    %v1080 = vsub.f32 %v1074, %v1076
    %v1081 = vmax.f32 %v1077, 0.0
    %v1082 = vmax.f32 %v1078, 0.0
    %v1083 = vmax.f32 %v1079, 0.0
    %v1084 = vmax.f32 %v1080, 0.0
    %v1085 = vadd.f32 %v1081, %v1076
    %v1086 = vadd.f32 %v1082, %v1076
    %v1087 = vadd.f32 %v1083, %v1076
    %v1088 = vadd.f32 %v1084, %v1076
    %v1093 = vcombine.low %v1085, %v1086
    %v1094 = vcombine.low %v1087, %v1088
    %v1096 = vunpack.c.l.s4 1983009808
    %v1097 = vunpack.c.0.s8 %v1096
    %v1098 = vlaneseq
    %v1099 = vshrl.u32 %v1098, 7
    %v1100 = vsub.s32 %v1097, %v1099
    %v1101 = vrot.slane %v1093, %v1100
    %v1103 = vunpack.c.l.s4 1983009808
    %v1104 = vunpack.c.0.s8 %v1103
    %v1105 = vlaneseq
    %v1106 = vshrl.u32 %v1105, 7
    %v1107 = vsub.s32 %v1104, %v1106
    %v1108 = vrot.slane %v1094, %v1107
    %v1109 = vcombine.low %v1101, %v1108
    %vm1111 = vcmask 1041408
    %vm1112 = vcmask 1043458
    %vm1113 = vmor %vm1112, %vm1111
    %vm1114 = vcmask 1045508
    %vm1115 = vmor %vm1114, %vm1113
    %vm1116 = vcmask 130054
    %vm1117 = vmor %vm1116, %vm1115
    %1118 = vst.msk [vmem:[#allocation5] sm:$0xff] %vm1117, %v1109
    // Predicated region
    $region30: #{tpu_custom_call.1} parent=1 // pred_check
      _
    $region31: #{tpu_custom_call.1} parent=1 // pred_check_branch
      %1120 = sbr.rel (0) target = $region33
    $region32: #{tpu_custom_call.1} parent=1 // pred_region
      %s1122 = ssub.s32 128, 128
      %1123 = vsyncadd [#allocation3], %s1122
      %s1125 = sshll.u32 [#allocation5], 4
      %s1126 = int_to_ptr.vmem [resolvable:$true] %s1125
      %1128 = dma.vmem_to_hbm [thread:$0]  %s1126, 128, %s6, [#allocation3]
    $region33: #{tpu_custom_call.1} parent=1 // pred_fallthru
      _
    // Predicated region
    $region34: #{tpu_custom_call.1} parent=1 // pred_check
      _
    $region35: #{tpu_custom_call.1} parent=1 // pred_check_branch
      %1130 = sbr.rel (0) target = $region37
    $region36: #{tpu_custom_call.1} parent=1 // pred_region
      %1131 = dma.done [#allocation3], 128
    $region37: #{tpu_custom_call.1} parent=1 // pred_fallthru
      _
    %1132 = vsyncpa [#allocation3], 1
    %1133 = vsyncpa [#allocation4], 1

</llo_original>
